<compile_context>
chip_gen: v6e
topology: v6e:2x2x1
jax: 0.10.0
libtpu: 0.0.40
codegen_flags: <defaults>
</compile_context>

<pallas_src>
from functools import lru_cache

import numpy as np
import jax
import jax.numpy as jnp
from jax.experimental import pallas as pl
from jax.experimental.pallas import tpu as pltpu


def _round_up(x, m):
    return (x + m - 1) // m * m


# ----------------------------------------------------------------------------
# Kernel: one [C, P] channels-first tile of pixels.
#   x_ref  : [C, P]            (x1 = rows 0..half-1, x2 = rows half..C-1)
#   w1t    : [hidden_pad, half]   (x.dtype)     b1 : [hidden_pad, 1]  (f32)
#   w2s    : [C, hidden_pad]  = S1 @ W2^T  (f32, shuffle folded into W2)
#   b2s    : [C, 1]           = S1 @ b2    (f32)
#   s2     : [C, half]        0/1 scatter routing x2 rows to shuffled slots
#   o_ref  : [C, P]           already channel-shuffled output
# ----------------------------------------------------------------------------
def _split_point_mlp_kernel(x_ref, w1t_ref, b1_ref, w2s_ref, b2s_ref, s2_ref, o_ref):
    half = s2_ref.shape[1]

    x1 = x_ref[0:half, :]     # native dtype (f32 or bf16) straight into the MXU
    x2 = x_ref[half:, :]

    # Conv1x1 (C/2 -> hidden): h = W1^T @ x1 + b1   (f32 accumulate)
    h = jnp.dot(w1t_ref[...], x1, preferred_element_type=jnp.float32) + b1_ref[...]
    # SiLU on the f32 accumulator
    h = h * jax.nn.sigmoid(h)
    # Conv1x1 (hidden -> C/2) with the channel shuffle pre-folded into the
    # weights, plus the x2 pass-through scattered to its shuffled channel
    # positions via a 0/1 matmul (idle MXU; keeps the [C, P] store lane-dense).
    y = jnp.dot(w2s_ref[...], h, preferred_element_type=jnp.float32) + b2s_ref[...]
    y = y + jnp.dot(s2_ref[...], x2, preferred_element_type=jnp.float32)

    o_ref[...] = y.astype(o_ref.dtype)


# ----------------------------------------------------------------------------
# Host-side (cached) construction of the channel-shuffle scatter matrices.
# ----------------------------------------------------------------------------
@lru_cache(maxsize=None)
def _shuffle_scatters(C, groups):
    half = C // 2
    d = C // groups
    # rearrange 'b (g d) h w -> b (d g) h w':
    #   output channel (d_idx*g + g_idx) <- concat([y1, x2]) channel (g_idx*d + d_idx)
    perm = np.empty((C,), dtype=np.int64)
    for c_in in range(C):
        g_idx, d_idx = divmod(c_in, d)
        perm[d_idx * groups + g_idx] = c_in
    s1 = np.zeros((C, half), np.float32)   # routes y1 rows -> shuffled output rows
    s2 = np.zeros((C, half), np.float32)   # routes x2 rows -> shuffled output rows
    for c_out in range(C):
        c_in = int(perm[c_out])
        if c_in < half:
            s1[c_out, c_in] = 1.0
        else:
            s2[c_out, c_in - half] = 1.0
    return s1, s2


def prepare_split_point_mlp(params, dim, *, groups=8):
    """One-time weight folding: shuffle scatter folded into W2/b2, channels-first
    weight layouts, hidden dim zero-padded to a multiple of 8."""
    w1, b1, w2, b2 = params["w1"], params["b1"], params["w2"], params["b2"]
    assert dim % 2 == 0 and dim % groups == 0
    half = dim // 2
    hidden = w1.shape[1]
    hidden_pad = _round_up(max(hidden, 8), 8)

    s1, s2 = _shuffle_scatters(dim, groups)

    w1t = jnp.zeros((hidden_pad, half), jnp.float32)
    w1t = w1t.at[:hidden, :].set(jnp.asarray(w1, jnp.float32).T)
    b1c = jnp.zeros((hidden_pad, 1), jnp.float32)
    b1c = b1c.at[:hidden, :].set(jnp.asarray(b1, jnp.float32).reshape(hidden, 1))

    w2s_full = jnp.asarray(s1) @ jnp.asarray(w2, jnp.float32).T            # [C, hidden]
    w2s = jnp.zeros((dim, hidden_pad), jnp.float32)
    w2s = w2s.at[:, :hidden].set(w2s_full)
    b2s = jnp.asarray(s1) @ jnp.asarray(b2, jnp.float32).reshape(half, 1)  # [C, 1]

    return {"w1t": w1t, "b1": b1c, "w2s": w2s, "b2s": b2s, "s2": jnp.asarray(s2)}


# ----------------------------------------------------------------------------
# Wrapper: flattens NCHW -> [B, C, H*W] (free reshape) and runs one fused pass.
# ----------------------------------------------------------------------------
def split_point_mlp_forward(x_nchw, prepped, *, tile_pixels=32768):
    B, C, H, W = x_nchw.shape
    half = C // 2
    hidden_pad = prepped["w1t"].shape[0]
    HW = H * W
    xdt = x_nchw.dtype

    # NCHW -> [B, C, H*W]: pure metadata reshape, no HBM traffic.
    x_rows = x_nchw.reshape(B, C, HW)

    # Weights that multiply x go in x's dtype (bf16 stays bf16 into the MXU);
    # everything touching the f32 accumulator stays f32.
    w1t = prepped["w1t"].astype(xdt)
    s2j = prepped["s2"].astype(xdt)
    b1c, w2s, b2s = prepped["b1"], prepped["w2s"], prepped["b2s"]

    # Pixel-tile size: as large as possible, 128-aligned, within a conservative
    # VMEM budget (double-buffered in+out tiles plus f32 temps) that fits the
    # smallest default scoped-VMEM limit (v5e 16 MiB, v7x 32 MiB).
    itemsize = jnp.dtype(xdt).itemsize
    bytes_per_col = 4 * C * itemsize + 4 * (hidden_pad + 2 * C)
    vmem_budget = 12 * 1024 * 1024
    tp_cap = max(128, (vmem_budget // bytes_per_col) // 128 * 128)
    tp = min(int(tile_pixels), _round_up(HW, 128), tp_cap)
    tp = max(128, (tp // 128) * 128)
    if B == 1:
        # keep >= 2 pixel tiles so both v7x TensorCores get parallel work
        tp = min(tp, max(128, _round_up(pl.cdiv(HW, 2), 128)))

    grid = (B, pl.cdiv(HW, tp))   # ragged last block handled by Pallas masking

    out = pl.pallas_call(
        _split_point_mlp_kernel,
        out_shape=jax.ShapeDtypeStruct((B, C, HW), xdt),
        grid_spec=pltpu.PrefetchScalarGridSpec(
            num_scalar_prefetch=0,
            grid=grid,
            in_specs=[
                pl.BlockSpec((None, C, tp), lambda b, i: (b, 0, i)),       # x tile [C, tp]
                pl.BlockSpec((hidden_pad, half), lambda b, i: (0, 0)),     # W1^T
                pl.BlockSpec((hidden_pad, 1),    lambda b, i: (0, 0)),     # b1
                pl.BlockSpec((C, hidden_pad),    lambda b, i: (0, 0)),     # S1 @ W2^T
                pl.BlockSpec((C, 1),             lambda b, i: (0, 0)),     # S1 @ b2
                pl.BlockSpec((C, half),          lambda b, i: (0, 0)),     # S2
            ],
            out_specs=pl.BlockSpec((None, C, tp), lambda b, i: (b, 0, i)),
        ),
        compiler_params=pltpu.CompilerParams(
            dimension_semantics=("parallel", "parallel"),
        ),
    )(x_rows, w1t, b1c, w2s, b2s, s2j)

    return out.reshape(B, C, H, W)


def init_params(key, dim, mlp_ratio=1.25):
    """Deterministic synthetic init (shapes match nn.Conv2d 1x1 weights)."""
    half = dim // 2
    hidden = int(half * mlp_ratio)
    k1, k2, k3, k4 = jax.random.split(key, 4)
    s1 = 1.0 / jnp.sqrt(half)
    s2 = 1.0 / jnp.sqrt(hidden)
    return {
        "w1": jax.random.uniform(k1, (half, hidden), jnp.float32, -s1, s1),
        "b1": jax.random.uniform(k2, (1, hidden), jnp.float32, -s1, s1),
        "w2": jax.random.uniform(k3, (hidden, half), jnp.float32, -s2, s2),
        "b2": jax.random.uniform(k4, (1, half), jnp.float32, -s2, s2),
    }


def _reference_forward(x_nchw, params, groups=8):
    """Pure-JAX reference mirroring the PyTorch module (f32 math)."""
    w1, b1, w2, b2 = params["w1"], params["b1"], params["w2"], params["b2"]
    B, C, H, W = x_nchw.shape
    half = C // 2
    xf = x_nchw.astype(jnp.float32)
    x1, x2 = xf[:, :half], xf[:, half:]
    r = jnp.transpose(x1, (0, 2, 3, 1)).reshape(-1, half)
    h = r @ w1 + b1
    h = h * jax.nn.sigmoid(h)
    y = h @ w2 + b2
    y1 = jnp.transpose(y.reshape(B, H, W, half), (0, 3, 1, 2))
    out = jnp.concatenate([y1, x2], axis=1)
    d = C // groups
    out = out.reshape(B, groups, d, H, W).transpose(0, 2, 1, 3, 4).reshape(B, C, H, W)
    return out


if __name__ == "__main__":
    # dim must be divisible by 8 (rearrange g=8) and even (chunk).
    B, dim = 2, 16
    key = jax.random.PRNGKey(0)
    kx, kp, kx2 = jax.random.split(key, 3)

    params = init_params(kp, dim, mlp_ratio=1.25)
    prepped = prepare_split_point_mlp(params, dim, groups=8)

    # 1) f32, tile == full spatial extent
    x = jax.random.normal(kx, (B, dim, 16, 16), dtype=jnp.float32)
    out = jax.block_until_ready(split_point_mlp_forward(x, prepped))
    ref = _reference_forward(x, params, groups=8)
    assert out.shape == x.shape
    assert jnp.allclose(out, ref, atol=2e-5, rtol=2e-5), float(jnp.max(jnp.abs(out - ref)))

    # 2) f32, spatial size NOT a multiple of the pixel tile (ragged last block,
    #    no padding / slicing in the wrapper).
    x_r = jax.random.normal(kx2, (B, dim, 20, 20), dtype=jnp.float32)
    out_r = jax.block_until_ready(split_point_mlp_forward(x_r, prepped, tile_pixels=256))
    ref_r = _reference_forward(x_r, params, groups=8)
    assert jnp.allclose(out_r, ref_r, atol=2e-5, rtol=2e-5), float(jnp.max(jnp.abs(out_r - ref_r)))

    # 3) bf16 path (no f32 upcast of x inside the kernel), loose tolerance.
    x_bf = x.astype(jnp.bfloat16)
    out_bf = jax.block_until_ready(split_point_mlp_forward(x_bf, prepped))
    ref_bf = _reference_forward(x_bf, params, groups=8)
    assert jnp.allclose(out_bf.astype(jnp.float32), ref_bf, atol=8e-2, rtol=5e-2)

    print("KERNEL_OK")
</pallas_src>

<mosaic_0001>
module attributes {stable_mosaic.version = 11 : i64} {
  func.func @_split_point_mlp_kernel(%arg0: i32, %arg1: i32, %arg2: memref<1x16x256xf32, #tpu.memory_space<vmem>>, %arg3: memref<16x8xf32, #tpu.memory_space<vmem>>, %arg4: memref<16x1xf32, #tpu.memory_space<vmem>>, %arg5: memref<16x16xf32, #tpu.memory_space<vmem>>, %arg6: memref<16x1xf32, #tpu.memory_space<vmem>>, %arg7: memref<16x8xf32, #tpu.memory_space<vmem>>, %arg8: memref<1x16x256xf32, #tpu.memory_space<vmem>>) attributes {dimension_semantics = [#tpu.dimension_semantics<parallel>, #tpu.dimension_semantics<parallel>], iteration_bounds = array<i64: 2, 1>, scalar_prefetch = 0 : i64, scratch_operands = 0 : i64, tpu.core_type = #tpu.core_type<tc>, window_params = [{transform_indices = @transform_0, window_bounds = array<i64: 1, 16, 256>}, {pipeline_mode = #tpu.pipeline_mode<synchronous>, transform_indices = @transform_1, window_bounds = array<i64: 16, 8>}, {pipeline_mode = #tpu.pipeline_mode<synchronous>, transform_indices = @transform_2, window_bounds = array<i64: 16, 1>}, {pipeline_mode = #tpu.pipeline_mode<synchronous>, transform_indices = @transform_3, window_bounds = array<i64: 16, 16>}, {pipeline_mode = #tpu.pipeline_mode<synchronous>, transform_indices = @transform_4, window_bounds = array<i64: 16, 1>}, {pipeline_mode = #tpu.pipeline_mode<synchronous>, transform_indices = @transform_5, window_bounds = array<i64: 16, 8>}, {transform_indices = @transform_6, window_bounds = array<i64: 1, 16, 256>}]} {
    %c0 = arith.constant 0 : index
    %c0_0 = arith.constant 0 : index
    %c0_1 = arith.constant 0 : index
    %0 = vector.load %arg2[%c0, %c0_0, %c0_1] : memref<1x16x256xf32, #tpu.memory_space<vmem>>, vector<1x8x256xf32>
    %1 = vector.shape_cast %0 : vector<1x8x256xf32> to vector<8x256xf32>
    %c0_2 = arith.constant 0 : index
    %c8 = arith.constant 8 : index
    %c0_3 = arith.constant 0 : index
    %2 = vector.load %arg2[%c0_2, %c8, %c0_3] : memref<1x16x256xf32, #tpu.memory_space<vmem>>, vector<1x8x256xf32>
    %3 = vector.shape_cast %2 : vector<1x8x256xf32> to vector<8x256xf32>
    %c0_4 = arith.constant 0 : index
    %c0_5 = arith.constant 0 : index
    %4 = vector.load %arg3[%c0_4, %c0_5] : memref<16x8xf32, #tpu.memory_space<vmem>>, vector<16x8xf32>
    %cst = arith.constant dense<0.000000e+00> : vector<16x256xf32>
    %5 = tpu.matmul %4, %1, %cst {dimension_numbers = #tpu.dot_dimension_numbers<[1], [0], [0], [1], [0, 0, 1, 1], [], []>} : vector<16x8xf32>, vector<8x256xf32>, vector<16x256xf32> -> vector<16x256xf32>
    %c0_6 = arith.constant 0 : index
    %c0_7 = arith.constant 0 : index
    %6 = vector.load %arg4[%c0_6, %c0_7] : memref<16x1xf32, #tpu.memory_space<vmem>>, vector<16x1xf32>
    %7 = vector.broadcast %6 : vector<16x1xf32> to vector<16x256xf32>
    %8 = arith.addf %5, %7 : vector<16x256xf32>
    %9 = arith.negf %8 : vector<16x256xf32>
    %10 = math.exp %9 : vector<16x256xf32>
    %cst_8 = arith.constant 1.000000e+00 : f32
    %11 = vector.broadcast %cst_8 : f32 to vector<16x256xf32>
    %12 = arith.addf %11, %10 : vector<16x256xf32>
    %13 = arith.divf %11, %12 : vector<16x256xf32>
    %14 = arith.mulf %8, %13 : vector<16x256xf32>
    %c0_9 = arith.constant 0 : index
    %c0_10 = arith.constant 0 : index
    %15 = vector.load %arg5[%c0_9, %c0_10] : memref<16x16xf32, #tpu.memory_space<vmem>>, vector<16x16xf32>
    %cst_11 = arith.constant dense<0.000000e+00> : vector<16x256xf32>
    %16 = tpu.matmul %15, %14, %cst_11 {dimension_numbers = #tpu.dot_dimension_numbers<[1], [0], [0], [1], [0, 0, 1, 1], [], []>} : vector<16x16xf32>, vector<16x256xf32>, vector<16x256xf32> -> vector<16x256xf32>
    %c0_12 = arith.constant 0 : index
    %c0_13 = arith.constant 0 : index
    %17 = vector.load %arg6[%c0_12, %c0_13] : memref<16x1xf32, #tpu.memory_space<vmem>>, vector<16x1xf32>
    %18 = vector.broadcast %17 : vector<16x1xf32> to vector<16x256xf32>
    %19 = arith.addf %16, %18 : vector<16x256xf32>
    %c0_14 = arith.constant 0 : index
    %c0_15 = arith.constant 0 : index
    %20 = vector.load %arg7[%c0_14, %c0_15] : memref<16x8xf32, #tpu.memory_space<vmem>>, vector<16x8xf32>
    %cst_16 = arith.constant dense<0.000000e+00> : vector<16x256xf32>
    %21 = tpu.matmul %20, %3, %cst_16 {dimension_numbers = #tpu.dot_dimension_numbers<[1], [0], [0], [1], [0, 0, 1, 1], [], []>} : vector<16x8xf32>, vector<8x256xf32>, vector<16x256xf32> -> vector<16x256xf32>
    %22 = arith.addf %19, %21 : vector<16x256xf32>
    %c0_17 = arith.constant 0 : index
    %c0_18 = arith.constant 0 : index
    %c0_19 = arith.constant 0 : index
    %23 = vector.load %arg8[%c0_17, %c0_18, %c0_19] : memref<1x16x256xf32, #tpu.memory_space<vmem>>, vector<1x16x256xf32>
    %24 = vector.shape_cast %23 : vector<1x16x256xf32> to vector<16x256xf32>
    %25 = vector.shape_cast %22 : vector<16x256xf32> to vector<1x16x256xf32>
    tpu.vector_store %arg8[%c0_17, %c0_18, %c0_19], %25 {strides = array<i32>} : memref<1x16x256xf32, #tpu.memory_space<vmem>>, vector<1x16x256xf32>,
    return
  }
  func.func @transform_0(%arg0: i32, %arg1: i32) -> (i32, i32, i32) {
    %c0_i32 = arith.constant 0 : i32
    %c0_i32_0 = arith.constant 0 : i32
    return %arg0, %c0_i32, %arg1 : i32, i32, i32
  }
  func.func @transform_1(%arg0: i32, %arg1: i32) -> (i32, i32) {
    %c0_i32 = arith.constant 0 : i32
    %c0_i32_0 = arith.constant 0 : i32
    %c0_i32_1 = arith.constant 0 : i32
    return %c0_i32, %c0_i32_0 : i32, i32
  }
  func.func @transform_2(%arg0: i32, %arg1: i32) -> (i32, i32) {
    %c0_i32 = arith.constant 0 : i32
    %c0_i32_0 = arith.constant 0 : i32
    %c0_i32_1 = arith.constant 0 : i32
    return %c0_i32, %c0_i32_0 : i32, i32
  }
  func.func @transform_3(%arg0: i32, %arg1: i32) -> (i32, i32) {
    %c0_i32 = arith.constant 0 : i32
    %c0_i32_0 = arith.constant 0 : i32
    %c0_i32_1 = arith.constant 0 : i32
    return %c0_i32, %c0_i32_0 : i32, i32
  }
  func.func @transform_4(%arg0: i32, %arg1: i32) -> (i32, i32) {
    %c0_i32 = arith.constant 0 : i32
    %c0_i32_0 = arith.constant 0 : i32
    %c0_i32_1 = arith.constant 0 : i32
    return %c0_i32, %c0_i32_0 : i32, i32
  }
  func.func @transform_5(%arg0: i32, %arg1: i32) -> (i32, i32) {
    %c0_i32 = arith.constant 0 : i32
    %c0_i32_0 = arith.constant 0 : i32
    %c0_i32_1 = arith.constant 0 : i32
    return %c0_i32, %c0_i32_0 : i32, i32
  }
  func.func @transform_6(%arg0: i32, %arg1: i32) -> (i32, i32, i32) {
    %c0_i32 = arith.constant 0 : i32
    %c0_i32_0 = arith.constant 0 : i32
    return %arg0, %c0_i32, %arg1 : i32, i32, i32
  }
}

</mosaic_0001>

<llo_original>
// kernel: tpu_custom_call.1
$region0: #{tpu_custom_call.1}
  #allocation0 [shape = 'u32[]', space=smem, size = 0x4, offset = 0x4, fixed_abs, tag = 'smem constant byte address 0x4 - core index']
  #allocation1 [shape = 'u32[144,128]{1,0:T(1,128)}', space=vmem, size = 0x12000, scoped, tag = 'internal scratch']
  %s0 = inlined_call_operand.vmem [shape: f32[2,16,256], index: 0, kind: input, shape index: {}]
  %s1 = inlined_call_operand.vmem [shape: f32[16,8], index: 1, kind: input, shape index: {}]
  %s2 = inlined_call_operand.vmem [shape: f32[16,1], index: 2, kind: input, shape index: {}]
  %s3 = inlined_call_operand.vmem [shape: f32[16,16], index: 3, kind: input, shape index: {}]
  %s4 = inlined_call_operand.vmem [shape: f32[16,1], index: 4, kind: input, shape index: {}]
  %s5 = inlined_call_operand.vmem [shape: f32[16,8], index: 5, kind: input, shape index: {}]
  %s6 = inlined_call_operand.hbm [shape: f32[2,16,256], index: 6, kind: output, shape index: {}]
  %s7 = sld [smem:[#allocation0]]
  $region57: #{tpu_custom_call.1} parent=0
    _
  %s9 = ssub.s32 1, %s7
  %s10 = scalar_select 0, %s9, %s7
  $region1: #{tpu_custom_call.1} parent=0
    #allocation2 [shape = 'u8[32768]{0}', space=vmem, size = 0x8000, scoped, tag = 'output window, operand 0']
    #allocation3 [shape = 's32[2]{0}', space=sflag, size = 0x8, scoped, tag = 'scoped memory for tpu_custom_call.1']
    %11 = vsyncpa [#allocation3], 0
    %s12 = scalar_lea.sflag [#allocation3], 1
    %13 = vsyncpa %s12, 0
    loop: start=0, step=1, limit=4
    $region2: #{tpu_custom_call.1} parent=1 // loop_pre_header
      _
    $region3: #{tpu_custom_call.1} parent=1 // loop_header
      %s15 = sphi 0, %s19
      %p16 = scmp.ge.s32.totalorder %s15, 4
      %s22 = sphi 0, %s34
      %s23 = sphi 0, %s30
      %s24 = sphi 0, %s22
      %s25 = sphi 0, %s23
      %s26 = sphi 0, %s24
      %s27 = sphi 0, %s25
      %s39 = sphi 0, %s41
      %s42 = sphi 0, %s39
      %s43 = sphi 0, %s42
      %s59 = sphi 0, %s43
      %s63 = sphi 0, %s63
      %s65 = sphi 0, %s63
      %s66 = sphi 0, %s65
      %s80 = sphi 0, %s66
      %s84 = sphi 0, %s84
      %s86 = sphi 0, %s84
      %s87 = sphi 0, %s86
      %s101 = sphi 0, %s87
      %s105 = sphi 0, %s105
      %s107 = sphi 0, %s105
      %s108 = sphi 0, %s107
      %s122 = sphi 0, %s108
      %s126 = sphi 0, %s126
      %s128 = sphi 0, %s126
      %s129 = sphi 0, %s128
      %s143 = sphi 0, %s129
      %s147 = sphi 0, %s147
      %s149 = sphi 0, %s147
      %s150 = sphi 0, %s149
      %s164 = sphi 0, %s150
      %s172 = sphi 0, %s174
      %s175 = sphi 0, %s172
      %s176 = sphi 0, %s175
      %s192 = sphi 0, %s176
    $region4: #{tpu_custom_call.1} parent=1 // loop_header_branch
      %18 = sbr.rel (%p16) target = $region8
    $region5: #{tpu_custom_call.1} parent=1 // loop_body
      %s20 = ssub.s32 %s15, 1
      %s21 = ssub.s32 %s15, 2
      %s28 = sadd.s32 1, %s23
      %p29 = scmp.ge.s32.totalorder %s28, 1
      %s30 = scalar_select %p29, 0, %s28
      %s31 = sadd.s32 1, %s22
      %s32 = scalar_select %p29, %s31, %s22
      %p33 = scmp.ge.s32.totalorder %s32, 2
      %s34 = scalar_select %p33, 0, %s32
      %s35 = ssub.s32 %s22, %s34
      %s36 = ssub.s32 %s23, %s30
      %s37 = sor.u32 %s35, %s36
      %p38 = scmp.eq.s32.totalorder %s37, 0
      %s40 = sadd.s32 %s39, 1
      %s41 = scalar_select %p38, %s39, %s40
      %p44 = pneg %p38
      %p45 = scmp.eq.s32.totalorder %s15, 1
      %p46 = por %p44, %p45
      %p47 = scmp.ne.s32.totalorder %s39, %s42
      %p48 = scmp.eq.s32.totalorder %s15, 0
      %p49 = por %p47, %p48
      %p50 = scmp.ne.s32.totalorder %s39, %s42
      %p51 = scmp.eq.s32.totalorder %s20, 1
      %p52 = por %p50, %p51
      %p53 = scmp.ne.s32.totalorder %s42, %s43
      %p54 = scmp.eq.s32.totalorder %s20, 0
      %p55 = por %p53, %p54
      %p56 = scmp.ne.s32.totalorder %s42, %s43
      %p57 = scmp.eq.s32.totalorder %s21, 1
      %p58 = por %p56, %p57
      %p60 = scmp.ne.s32.totalorder %s43, %s59
      %p61 = scmp.eq.s32.totalorder %s21, 0
      %p62 = por %p60, %p61
      %s64 = sadd.s32 %s63, 1
      %p67 = scmp.eq.s32.totalorder %s15, 1
      %p68 = scmp.ne.s32.totalorder %s63, %s65
      %p69 = scmp.eq.s32.totalorder %s15, 0
      %p70 = por %p68, %p69
      %p71 = scmp.ne.s32.totalorder %s63, %s65
      %p72 = scmp.eq.s32.totalorder %s20, 1
      %p73 = por %p71, %p72
      %p74 = scmp.ne.s32.totalorder %s65, %s66
      %p75 = scmp.eq.s32.totalorder %s20, 0
      %p76 = por %p74, %p75
      %p77 = scmp.ne.s32.totalorder %s65, %s66
      %p78 = scmp.eq.s32.totalorder %s21, 1
      %p79 = por %p77, %p78
      %p81 = scmp.ne.s32.totalorder %s66, %s80
      %p82 = scmp.eq.s32.totalorder %s21, 0
      %p83 = por %p81, %p82
      %s85 = sadd.s32 %s84, 1
      %p88 = scmp.eq.s32.totalorder %s15, 1
      %p89 = scmp.ne.s32.totalorder %s84, %s86
      %p90 = scmp.eq.s32.totalorder %s15, 0
      %p91 = por %p89, %p90
      %p92 = scmp.ne.s32.totalorder %s84, %s86
      %p93 = scmp.eq.s32.totalorder %s20, 1
      %p94 = por %p92, %p93
      %p95 = scmp.ne.s32.totalorder %s86, %s87
      %p96 = scmp.eq.s32.totalorder %s20, 0
      %p97 = por %p95, %p96
      %p98 = scmp.ne.s32.totalorder %s86, %s87
      %p99 = scmp.eq.s32.totalorder %s21, 1
      %p100 = por %p98, %p99
      %p102 = scmp.ne.s32.totalorder %s87, %s101
      %p103 = scmp.eq.s32.totalorder %s21, 0
      %p104 = por %p102, %p103
      %s106 = sadd.s32 %s105, 1
      %p109 = scmp.eq.s32.totalorder %s15, 1
      %p110 = scmp.ne.s32.totalorder %s105, %s107
      %p111 = scmp.eq.s32.totalorder %s15, 0
      %p112 = por %p110, %p111
      %p113 = scmp.ne.s32.totalorder %s105, %s107
      %p114 = scmp.eq.s32.totalorder %s20, 1
      %p115 = por %p113, %p114
      %p116 = scmp.ne.s32.totalorder %s107, %s108
      %p117 = scmp.eq.s32.totalorder %s20, 0
      %p118 = por %p116, %p117
      %p119 = scmp.ne.s32.totalorder %s107, %s108
      %p120 = scmp.eq.s32.totalorder %s21, 1
      %p121 = por %p119, %p120
      %p123 = scmp.ne.s32.totalorder %s108, %s122
      %p124 = scmp.eq.s32.totalorder %s21, 0
      %p125 = por %p123, %p124
      %s127 = sadd.s32 %s126, 1
      %p130 = scmp.eq.s32.totalorder %s15, 1
      %p131 = scmp.ne.s32.totalorder %s126, %s128
      %p132 = scmp.eq.s32.totalorder %s15, 0
      %p133 = por %p131, %p132
      %p134 = scmp.ne.s32.totalorder %s126, %s128
      %p135 = scmp.eq.s32.totalorder %s20, 1
      %p136 = por %p134, %p135
      %p137 = scmp.ne.s32.totalorder %s128, %s129
      %p138 = scmp.eq.s32.totalorder %s20, 0
      %p139 = por %p137, %p138
      %p140 = scmp.ne.s32.totalorder %s128, %s129
      %p141 = scmp.eq.s32.totalorder %s21, 1
      %p142 = por %p140, %p141
      %p144 = scmp.ne.s32.totalorder %s129, %s143
      %p145 = scmp.eq.s32.totalorder %s21, 0
      %p146 = por %p144, %p145
      %s148 = sadd.s32 %s147, 1
      %p151 = scmp.eq.s32.totalorder %s15, 1
      %p152 = scmp.ne.s32.totalorder %s147, %s149
      %p153 = scmp.eq.s32.totalorder %s15, 0
      %p154 = por %p152, %p153
      %p155 = scmp.ne.s32.totalorder %s147, %s149
      %p156 = scmp.eq.s32.totalorder %s20, 1
      %p157 = por %p155, %p156
      %p158 = scmp.ne.s32.totalorder %s149, %s150
      %p159 = scmp.eq.s32.totalorder %s20, 0
      %p160 = por %p158, %p159
      %p161 = scmp.ne.s32.totalorder %s149, %s150
      %p162 = scmp.eq.s32.totalorder %s21, 1
      %p163 = por %p161, %p162
      %p165 = scmp.ne.s32.totalorder %s150, %s164
      %p166 = scmp.eq.s32.totalorder %s21, 0
      %p167 = por %p165, %p166
      %s168 = ssub.s32 %s22, %s34
      %s169 = ssub.s32 %s23, %s30
      %s170 = sor.u32 %s168, %s169
      %p171 = scmp.eq.s32.totalorder %s170, 0
      %s173 = sadd.s32 %s172, 1
      %s174 = scalar_select %p171, %s172, %s173
      %p177 = pneg %p171
      %p178 = scmp.eq.s32.totalorder %s15, 1
      %p179 = por %p177, %p178
      %p180 = scmp.ne.s32.totalorder %s172, %s175
      %p181 = scmp.eq.s32.totalorder %s15, 0
      %p182 = por %p180, %p181
      %p183 = scmp.ne.s32.totalorder %s172, %s175
      %p184 = scmp.eq.s32.totalorder %s20, 1
      %p185 = por %p183, %p184
      %p186 = scmp.ne.s32.totalorder %s175, %s176
      %p187 = scmp.eq.s32.totalorder %s20, 0
      %p188 = por %p186, %p187
      %p189 = scmp.ne.s32.totalorder %s175, %s176
      %p190 = scmp.eq.s32.totalorder %s21, 1
      %p191 = por %p189, %p190
      %p193 = scmp.ne.s32.totalorder %s176, %s192
      %p194 = scmp.eq.s32.totalorder %s21, 0
      %p195 = por %p193, %p194
      %p196 = scmp.le.s32.totalorder 1, %s15
      %p197 = scmp.lt.s32.totalorder %s15, 3
      %p198 = pnand %p196, %p197
      %p199 = pneg %p198
      // Predicated region
      $region9: #{tpu_custom_call.1} parent=5 // pred_check
        _
      $region10: #{tpu_custom_call.1} parent=5 // pred_check_branch
        %201 = sbr.rel (%p198) target = $region12
      $region11: #{tpu_custom_call.1} parent=5 // pred_region
        %s202 = ssub.s32 %s15, 1
        // Predicated region
        $region13: #{tpu_custom_call.1} parent=11 // pred_check
          %p203 = pneg %p76
        $region14: #{tpu_custom_call.1} parent=11 // pred_check_branch
          %205 = sbr.rel (%p203) target = $region16
        $region15: #{tpu_custom_call.1} parent=11 // pred_region
          _
        $region16: #{tpu_custom_call.1} parent=11 // pred_fallthru
          _
        // Predicated region
        $region17: #{tpu_custom_call.1} parent=11 // pred_check
          %p206 = pneg %p97
        $region18: #{tpu_custom_call.1} parent=11 // pred_check_branch
          %208 = sbr.rel (%p206) target = $region20
        $region19: #{tpu_custom_call.1} parent=11 // pred_region
          _
        $region20: #{tpu_custom_call.1} parent=11 // pred_fallthru
          _
        // Predicated region
        $region21: #{tpu_custom_call.1} parent=11 // pred_check
          %p209 = pneg %p118
        $region22: #{tpu_custom_call.1} parent=11 // pred_check_branch
          %211 = sbr.rel (%p209) target = $region24
        $region23: #{tpu_custom_call.1} parent=11 // pred_region
          _
        $region24: #{tpu_custom_call.1} parent=11 // pred_fallthru
          _
        // Predicated region
        $region25: #{tpu_custom_call.1} parent=11 // pred_check
          %p212 = pneg %p139
        $region26: #{tpu_custom_call.1} parent=11 // pred_check_branch
          %214 = sbr.rel (%p212) target = $region28
        $region27: #{tpu_custom_call.1} parent=11 // pred_region
          _
        $region28: #{tpu_custom_call.1} parent=11 // pred_fallthru
          _
        // Predicated region
        $region29: #{tpu_custom_call.1} parent=11 // pred_check
          %p215 = pneg %p160
        $region30: #{tpu_custom_call.1} parent=11 // pred_check_branch
          %217 = sbr.rel (%p215) target = $region32
        $region31: #{tpu_custom_call.1} parent=11 // pred_region
          _
        $region32: #{tpu_custom_call.1} parent=11 // pred_fallthru
          _
      $region12: #{tpu_custom_call.1} parent=5 // pred_fallthru
        _
      %p218 = scmp.lt.s32.totalorder %s15, 2
      // Predicated region
      $region33: #{tpu_custom_call.1} parent=5 // pred_check
        %p219 = pneg %p218
      $region34: #{tpu_custom_call.1} parent=5 // pred_check_branch
        %221 = sbr.rel (%p219) target = $region36
      $region35: #{tpu_custom_call.1} parent=5 // pred_region
        // Predicated region
        $region37: #{tpu_custom_call.1} parent=35 // pred_check
          %p222 = pneg %p49
        $region38: #{tpu_custom_call.1} parent=35 // pred_check_branch
          %224 = sbr.rel (%p222) target = $region40
        $region39: #{tpu_custom_call.1} parent=35 // pred_region
          %s225 = smul.u32 2, %s23
          %p226 = scmp.lt.s32.totalorder %s22, 1
          %s227 = scalar_select %p226, %s22, 1
          %p228 = scmp.lt.s32.totalorder %s225, 1
          %s229 = scalar_select %p228, %s225, 1
          %s230 = smul.addr %s227, 4
          %s231 = sadd.s32 %s229, %s230
          %s232 = smul.addr %s231, 8
          %s233 = scalar_lea.vmem %s0, %s232
          %s234 = smul.u32 2, %s23
        $region40: #{tpu_custom_call.1} parent=35 // pred_fallthru
          _
      $region36: #{tpu_custom_call.1} parent=5 // pred_fallthru
        _
      %p235 = scmp.le.s32.totalorder 1, %s15
      %p236 = scmp.lt.s32.totalorder %s15, 3
      %p237 = pnand %p235, %p236
      %p238 = pneg %p237
      // Predicated region
      $region41: #{tpu_custom_call.1} parent=5 // pred_check
        _
      $region42: #{tpu_custom_call.1} parent=5 // pred_check_branch
        %240 = sbr.rel (%p237) target = $region44
      $region43: #{tpu_custom_call.1} parent=5 // pred_region
        %s241 = ssub.s32 %s15, 1
        %s242 = smul.u32 2, %s25
        %p243 = scmp.lt.s32.totalorder %s24, 1
        %s244 = scalar_select %p243, %s24, 1
        %p245 = scmp.lt.s32.totalorder %s242, 1
        %s246 = scalar_select %p245, %s242, 1
        %s247 = smul.addr %s244, 4
        %s248 = sadd.s32 %s246, %s247
        %s249 = smul.addr %s248, 8
        %s250 = scalar_lea.vmem %s0, %s249
        %p251 = pneg %p55
        %p252 = pneg %p52
        %p253 = pneg %p76
        %p254 = pneg %p73
        %p255 = pneg %p97
        %p256 = pneg %p94
        %p257 = pneg %p118
        %p258 = pneg %p115
        %p259 = pneg %p139
        %p260 = pneg %p136
        %p261 = pneg %p160
        %p262 = pneg %p157
        %p263 = pneg %p188
        %p264 = pneg %p185
        %s265 = sand.u32 %s175, 1
        %s266 = scalar_lea.sflag [#allocation3], %s265
        %s267 = sand.u32 %s175, 1
        %s268 = smul.addr %s267, 32
        %s269 = scalar_lea.vmem [#allocation2], %s268
        %s270 = smul.u32 2, %s25
        %p271 = scmp.lt.s32.totalorder %s24, 1
        %s272 = scalar_select %p271, %s24, 1
        %p273 = scmp.lt.s32.totalorder %s270, 1
        %s274 = scalar_select %p273, %s270, 1
        %s275 = smul.addr %s272, 4
        %s276 = sadd.s32 %s274, %s275
        %s277 = smul.addr %s276, 8
        %s278 = scalar_lea.vmem %s0, %s277
        %s279 = smul.u32 2, %s25
        %s280 = smul.u32 2, %s25
        %v281 = vld [vmem:[%s278] sm:$0xff]
        %v282 = vld [vmem:[%s278 + $0x8] sm:$0xff]
        %v283 = vld [vmem:[%s278 + $0x10] sm:$0xff]
        %v284 = vld [vmem:[%s278 + $0x18] sm:$0xff]
        %v285 = vld [vmem:[%s1] sm:$0xff]
        %v286 = vld [vmem:[%s1 + $0x8] sm:$0xff]
        %v287 = vld [vmem:[%s2] sm:$0xff]
        %v288 = vld [vmem:[%s2 + $0x8] sm:$0xff]
        %290 = vset.pattern.permute.xlu0 0
        %291 = vperm.xlu0 %290, %v287
        %v292 = vpop.permute.xlu0 %291
        %295 = vset.pattern.permute.xlu0 0
        %296 = vperm.xlu0 %295, %v288
        %v297 = vpop.permute.xlu0 %296
        %vm299 = vcmask 64512
        %v301 = vsel %vm299, %v285, 0
        %v304 = vsel %vm299, %v286, 0
        %306 = vmatprep.subr.mxu0 0.0
        %307 = vmatpush1.msra.mxu0 0.0
        %308 = vmatprep.subr.mxu0 0.0
        %309 = vmatpush1.msra.mxu0 0.0
        %310 = vmatprep.subr.mxu0 0.0
        %311 = vmatpush1.msra.mxu0 0.0
        %312 = vmatprep.subr.mxu0 0.0
        %313 = vmatpush1.msra.mxu0 0.0
        %314 = vmatprep.subr.mxu0 0.0
        %315 = vmatpush1.msra.mxu0 0.0
        %316 = vmatprep.subr.mxu0 0.0
        %317 = vmatpush1.msra.mxu0 0.0
        %318 = vmatprep.subr.mxu0 0.0
        %319 = vmatpush1.msra.mxu0 0.0
        %320 = vmatprep.subr.mxu0 0.0
        %321 = vmatpush1.msra.mxu0 0.0
        %322 = vmatprep.subr.mxu0 0.0
        %323 = vmatpush1.msra.mxu0 0.0
        %324 = vmatprep.subr.mxu0 0.0
        %325 = vmatpush1.msra.mxu0 0.0
        %326 = vmatprep.subr.mxu0 0.0
        %327 = vmatpush1.msra.mxu0 0.0
        %328 = vmatprep.subr.mxu0 0.0
        %329 = vmatpush1.msra.mxu0 0.0
        %330 = vmatprep.subr.mxu0 0.0
        %331 = vmatpush1.msra.mxu0 0.0
        %332 = vmatprep.subr.mxu0 0.0
        %333 = vmatpush1.msra.mxu0 0.0
        %334 = vmatprep.subr.mxu0 0.0
        %335 = vmatpush1.msra.mxu0 0.0
        %336 = vmatprep.subr.mxu0 %v282
        %337 = vmatpush1.msra.mxu0 %v281
        %338 = vmatprep.subr.mxu0 0.0
        %339 = vmatpush2.msra.mxu0 0.0
        %340 = vmatprep.subr.mxu0 0.0
        %341 = vmatpush2.msra.mxu0 0.0
        %342 = vmatprep.subr.mxu0 0.0
        %343 = vmatpush2.msra.mxu0 0.0
        %344 = vmatprep.subr.mxu0 0.0
        %345 = vmatpush2.msra.mxu0 0.0
        %346 = vmatprep.subr.mxu0 0.0
        %347 = vmatpush2.msra.mxu0 0.0
        %348 = vmatprep.subr.mxu0 0.0
        %349 = vmatpush2.msra.mxu0 0.0
        %350 = vmatprep.subr.mxu0 0.0
        %351 = vmatpush2.msra.mxu0 0.0
        %352 = vmatprep.subr.mxu0 0.0
        %353 = vmatpush2.msra.mxu0 0.0
        %354 = vmatprep.subr.mxu0 0.0
        %355 = vmatpush2.msra.mxu0 0.0
        %356 = vmatprep.subr.mxu0 0.0
        %357 = vmatpush2.msra.mxu0 0.0
        %358 = vmatprep.subr.mxu0 0.0
        %359 = vmatpush2.msra.mxu0 0.0
        %360 = vmatprep.subr.mxu0 0.0
        %361 = vmatpush2.msra.mxu0 0.0
        %362 = vmatprep.subr.mxu0 0.0
        %363 = vmatpush2.msra.mxu0 0.0
        %364 = vmatprep.subr.mxu0 0.0
        %365 = vmatpush2.msra.mxu0 0.0
        %366 = vmatprep.subr.mxu0 0.0
        %367 = vmatpush2.msra.mxu0 0.0
        %368 = vmatprep.subr.mxu0 0.0
        %369 = vmatpush2.msra.mxu0 0.0
        %370 = vmatprep.mubr.f32.mxu0 0.0
        %371 = vmatmul.mubr.f32.gmra.mxu0 %v301
        %v372 = vpop.f32.mrf.mxu0
        %v373 = vadd.f32 %v292, %v372
        %v374 = vpop.f32.mrf.mxu0
        %v375 = vadd.f32 %v292, %v374
        %376 = vmatprep.mubr.f32.mxu0 0.0
        %377 = vmatmul.mubr.f32.gmra.mxu0 %v304
        %v378 = vpop.f32.mrf.mxu0
        %v379 = vadd.f32 %v297, %v378
        %v380 = vpop.f32.mrf.mxu0
        %v381 = vadd.f32 %v297, %v380
        %382 = vdwg.mxu0
        %v383 = vxor.u32 %v373, 2147483648
        %v384 = vxor.u32 %v375, 2147483648
        %v385 = vxor.u32 %v379, 2147483648
        %v386 = vxor.u32 %v381, 2147483648
        %v387 = vmul.f32 %v383, 1.442695
        %v388 = vpow.pop %v387
        %v389 = vmul.f32 %v384, 1.442695
        %v390 = vpow.pop %v389
        %v391 = vmul.f32 %v385, 1.442695
        %v392 = vpow.pop %v391
        %v393 = vmul.f32 %v386, 1.442695
        %v394 = vpow.pop %v393
        %v395 = vadd.f32 %v388, 1.0
        %v396 = vadd.f32 %v390, 1.0
        %v397 = vadd.f32 %v392, 1.0
        %v398 = vadd.f32 %v394, 1.0
        %v399 = vrcp.pop %v395
        %v400 = vmul.f32 1.0, %v399
        %v401 = vrcp.pop %v396
        %v402 = vmul.f32 1.0, %v401
        %v403 = vrcp.pop %v397
        %v404 = vmul.f32 1.0, %v403
        %v405 = vrcp.pop %v398
        %v406 = vmul.f32 1.0, %v405
        %v407 = vmul.f32 %v373, %v400
        %v408 = vmul.f32 %v375, %v402
        %v409 = vmul.f32 %v379, %v404
        %v410 = vmul.f32 %v381, %v406
        %v411 = vld [vmem:[%s3] sm:$0xff]
        %v412 = vld [vmem:[%s3 + $0x8] sm:$0xff]
        %v413 = vld [vmem:[%s4] sm:$0xff]
        %v414 = vld [vmem:[%s4 + $0x8] sm:$0xff]
        %416 = vset.pattern.permute.xlu0 0
        %417 = vperm.xlu0 %416, %v413
        %v418 = vpop.permute.xlu0 %417
        %421 = vset.pattern.permute.xlu0 0
        %422 = vperm.xlu0 %421, %v414
        %v423 = vpop.permute.xlu0 %422
        %vm425 = vcmask 130048
        %v427 = vsel %vm425, %v411, 0
        %v430 = vsel %vm425, %v412, 0
        %432 = vmatprep.subr.mxu0 0.0
        %433 = vmatpush1.msra.mxu0 0.0
        %434 = vmatprep.subr.mxu0 0.0
        %435 = vmatpush1.msra.mxu0 0.0
        %436 = vmatprep.subr.mxu0 0.0
        %437 = vmatpush1.msra.mxu0 0.0
        %438 = vmatprep.subr.mxu0 0.0
        %439 = vmatpush1.msra.mxu0 0.0
        %440 = vmatprep.subr.mxu0 0.0
        %441 = vmatpush1.msra.mxu0 0.0
        %442 = vmatprep.subr.mxu0 0.0
        %443 = vmatpush1.msra.mxu0 0.0
        %444 = vmatprep.subr.mxu0 0.0
        %445 = vmatpush1.msra.mxu0 0.0
        %446 = vmatprep.subr.mxu0 0.0
        %447 = vmatpush1.msra.mxu0 0.0
        %448 = vmatprep.subr.mxu0 0.0
        %449 = vmatpush1.msra.mxu0 0.0
        %450 = vmatprep.subr.mxu0 0.0
        %451 = vmatpush1.msra.mxu0 0.0
        %452 = vmatprep.subr.mxu0 0.0
        %453 = vmatpush1.msra.mxu0 0.0
        %454 = vmatprep.subr.mxu0 0.0
        %455 = vmatpush1.msra.mxu0 0.0
        %456 = vmatprep.subr.mxu0 0.0
        %457 = vmatpush1.msra.mxu0 0.0
        %458 = vmatprep.subr.mxu0 0.0
        %459 = vmatpush1.msra.mxu0 0.0
        %460 = vmatprep.subr.mxu0 %v410
        %461 = vmatpush1.msra.mxu0 %v409
        %462 = vmatprep.subr.mxu0 %v408
        %463 = vmatpush1.msra.mxu0 %v407
        %464 = vmatprep.subr.mxu0 0.0
        %465 = vmatpush2.msra.mxu0 0.0
        %466 = vmatprep.subr.mxu0 0.0
        %467 = vmatpush2.msra.mxu0 0.0
        %468 = vmatprep.subr.mxu0 0.0
        %469 = vmatpush2.msra.mxu0 0.0
        %470 = vmatprep.subr.mxu0 0.0
        %471 = vmatpush2.msra.mxu0 0.0
        %472 = vmatprep.subr.mxu0 0.0
        %473 = vmatpush2.msra.mxu0 0.0
        %474 = vmatprep.subr.mxu0 0.0
        %475 = vmatpush2.msra.mxu0 0.0
        %476 = vmatprep.subr.mxu0 0.0
        %477 = vmatpush2.msra.mxu0 0.0
        %478 = vmatprep.subr.mxu0 0.0
        %479 = vmatpush2.msra.mxu0 0.0
        %480 = vmatprep.subr.mxu0 0.0
        %481 = vmatpush2.msra.mxu0 0.0
        %482 = vmatprep.subr.mxu0 0.0
        %483 = vmatpush2.msra.mxu0 0.0
        %484 = vmatprep.subr.mxu0 0.0
        %485 = vmatpush2.msra.mxu0 0.0
        %486 = vmatprep.subr.mxu0 0.0
        %487 = vmatpush2.msra.mxu0 0.0
        %488 = vmatprep.subr.mxu0 0.0
        %489 = vmatpush2.msra.mxu0 0.0
        %490 = vmatprep.subr.mxu0 0.0
        %491 = vmatpush2.msra.mxu0 0.0
        %492 = vmatprep.subr.mxu0 0.0
        %493 = vmatpush2.msra.mxu0 0.0
        %494 = vmatprep.subr.mxu0 0.0
        %495 = vmatpush2.msra.mxu0 0.0
        %496 = vmatprep.mubr.f32.mxu0 0.0
        %497 = vmatmul.mubr.f32.gmra.mxu0 %v427
        %v498 = vpop.f32.mrf.mxu0
        %v499 = vadd.f32 %v418, %v498
        %v500 = vpop.f32.mrf.mxu0
        %v501 = vadd.f32 %v418, %v500
        %502 = vmatprep.mubr.f32.mxu0 0.0
        %503 = vmatmul.mubr.f32.gmra.mxu0 %v430
        %v504 = vpop.f32.mrf.mxu0
        %v505 = vadd.f32 %v423, %v504
        %v506 = vpop.f32.mrf.mxu0
        %v507 = vadd.f32 %v423, %v506
        %508 = vdwg.mxu0
        %v509 = vld [vmem:[%s5] sm:$0xff]
        %v510 = vld [vmem:[%s5 + $0x8] sm:$0xff]
        %v512 = vsel %vm299, %v509, 0
        %v515 = vsel %vm299, %v510, 0
        %517 = vmatprep.subr.mxu0 0.0
        %518 = vmatpush1.msra.mxu0 0.0
        %519 = vmatprep.subr.mxu0 0.0
        %520 = vmatpush1.msra.mxu0 0.0
        %521 = vmatprep.subr.mxu0 0.0
        %522 = vmatpush1.msra.mxu0 0.0
        %523 = vmatprep.subr.mxu0 0.0
        %524 = vmatpush1.msra.mxu0 0.0
        %525 = vmatprep.subr.mxu0 0.0
        %526 = vmatpush1.msra.mxu0 0.0
        %527 = vmatprep.subr.mxu0 0.0
        %528 = vmatpush1.msra.mxu0 0.0
        %529 = vmatprep.subr.mxu0 0.0
        %530 = vmatpush1.msra.mxu0 0.0
        %531 = vmatprep.subr.mxu0 0.0
        %532 = vmatpush1.msra.mxu0 0.0
        %533 = vmatprep.subr.mxu0 0.0
        %534 = vmatpush1.msra.mxu0 0.0
        %535 = vmatprep.subr.mxu0 0.0
        %536 = vmatpush1.msra.mxu0 0.0
        %537 = vmatprep.subr.mxu0 0.0
        %538 = vmatpush1.msra.mxu0 0.0
        %539 = vmatprep.subr.mxu0 0.0
        %540 = vmatpush1.msra.mxu0 0.0
        %541 = vmatprep.subr.mxu0 0.0
        %542 = vmatpush1.msra.mxu0 0.0
        %543 = vmatprep.subr.mxu0 0.0
        %544 = vmatpush1.msra.mxu0 0.0
        %545 = vmatprep.subr.mxu0 0.0
        %546 = vmatpush1.msra.mxu0 0.0
        %547 = vmatprep.subr.mxu0 %v284
        %548 = vmatpush1.msra.mxu0 %v283
        %549 = vmatprep.subr.mxu0 0.0
        %550 = vmatpush2.msra.mxu0 0.0
        %551 = vmatprep.subr.mxu0 0.0
        %552 = vmatpush2.msra.mxu0 0.0
        %553 = vmatprep.subr.mxu0 0.0
        %554 = vmatpush2.msra.mxu0 0.0
        %555 = vmatprep.subr.mxu0 0.0
        %556 = vmatpush2.msra.mxu0 0.0
        %557 = vmatprep.subr.mxu0 0.0
        %558 = vmatpush2.msra.mxu0 0.0
        %559 = vmatprep.subr.mxu0 0.0
        %560 = vmatpush2.msra.mxu0 0.0
        %561 = vmatprep.subr.mxu0 0.0
        %562 = vmatpush2.msra.mxu0 0.0
        %563 = vmatprep.subr.mxu0 0.0
        %564 = vmatpush2.msra.mxu0 0.0
        %565 = vmatprep.subr.mxu0 0.0
        %566 = vmatpush2.msra.mxu0 0.0
        %567 = vmatprep.subr.mxu0 0.0
        %568 = vmatpush2.msra.mxu0 0.0
        %569 = vmatprep.subr.mxu0 0.0
        %570 = vmatpush2.msra.mxu0 0.0
        %571 = vmatprep.subr.mxu0 0.0
        %572 = vmatpush2.msra.mxu0 0.0
        %573 = vmatprep.subr.mxu0 0.0
        %574 = vmatpush2.msra.mxu0 0.0
        %575 = vmatprep.subr.mxu0 0.0
        %576 = vmatpush2.msra.mxu0 0.0
        %577 = vmatprep.subr.mxu0 0.0
        %578 = vmatpush2.msra.mxu0 0.0
        %579 = vmatprep.subr.mxu0 0.0
        %580 = vmatpush2.msra.mxu0 0.0
        %581 = vmatprep.mubr.f32.mxu0 0.0
        %582 = vmatmul.mubr.f32.gmra.mxu0 %v512
        %v583 = vpop.f32.mrf.mxu0
        %v584 = vadd.f32 0.0, %v583
        %v585 = vpop.f32.mrf.mxu0
        %v586 = vadd.f32 0.0, %v585
        %587 = vmatprep.mubr.f32.mxu0 0.0
        %588 = vmatmul.mubr.f32.gmra.mxu0 %v515
        %v589 = vpop.f32.mrf.mxu0
        %v590 = vadd.f32 0.0, %v589
        %v591 = vpop.f32.mrf.mxu0
        %v592 = vadd.f32 0.0, %v591
        %593 = vdwg.mxu0
        %v594 = vadd.f32 %v499, %v584
        %v595 = vadd.f32 %v501, %v586
        %v596 = vadd.f32 %v505, %v590
        %v597 = vadd.f32 %v507, %v592
        %598 = vst [vmem:[%s269] sm:$0xff] %v594
        %599 = vst [vmem:[%s269 + $0x8] sm:$0xff] %v595
        %600 = vst [vmem:[%s269 + $0x10] sm:$0xff] %v596
        %601 = vst [vmem:[%s269 + $0x18] sm:$0xff] %v597
        %s602 = sand.u32 %s175, 1
        %s603 = scalar_lea.sflag [#allocation3], %s602
        %s604 = sand.u32 %s175, 1
        %s605 = smul.addr %s604, 32
        %s606 = scalar_lea.vmem [#allocation2], %s605
        // Predicated region
        $region45: #{tpu_custom_call.1} parent=43 // pred_check
          %p607 = pneg %p185
        $region46: #{tpu_custom_call.1} parent=43 // pred_check_branch
          %609 = sbr.rel (%p607) target = $region48
        $region47: #{tpu_custom_call.1} parent=43 // pred_region
          %s610 = smul.u32 2, %s25
          %s612 = ssub.s32 512, 512
          %613 = vsyncadd %s603, %s612
          %s614 = smul.addr %s24, 4
          %s615 = sadd.s32 %s610, %s614
          %s616 = smul.addr %s615, 128
          %s617 = scalar_lea.hbm %s6, %s616
          %s618 = sshll.u32 %s606, 4
          %s619 = int_to_ptr.vmem [resolvable:$true] %s618
          %624 = dma.vmem_to_hbm [thread:$0]  %s619, 512, %s617, %s603, 256, 256, 16
        $region48: #{tpu_custom_call.1} parent=43 // pred_fallthru
          _
      $region44: #{tpu_custom_call.1} parent=5 // pred_fallthru
        _
      %p625 = scmp.le.s32.totalorder 2, %s15
      // Predicated region
      $region49: #{tpu_custom_call.1} parent=5 // pred_check
        %p626 = pneg %p625
      $region50: #{tpu_custom_call.1} parent=5 // pred_check_branch
        %628 = sbr.rel (%p626) target = $region52
      $region51: #{tpu_custom_call.1} parent=5 // pred_region
        %s629 = ssub.s32 %s15, 2
        // Predicated region
        $region53: #{tpu_custom_call.1} parent=51 // pred_check
          %p630 = pneg %p191
        $region54: #{tpu_custom_call.1} parent=51 // pred_check_branch
          %632 = sbr.rel (%p630) target = $region56
        $region55: #{tpu_custom_call.1} parent=51 // pred_region
          %s633 = sand.u32 %s176, 1
          %s634 = scalar_lea.sflag [#allocation3], %s633
          %s635 = sand.u32 %s176, 1
          %s636 = smul.addr %s635, 32
          %s637 = scalar_lea.vmem [#allocation2], %s636
          %638 = dma.done %s634, 512
        $region56: #{tpu_custom_call.1} parent=51 // pred_fallthru
          _
      $region52: #{tpu_custom_call.1} parent=5 // pred_fallthru
        _
    $region6: #{tpu_custom_call.1} parent=1 // loop_footer
      %s19 = sadd.s32 1, %s15
    $region7: #{tpu_custom_call.1} parent=1 // loop_footer_branch
      %14 = sbr.rel target = $region3
    $region8: #{tpu_custom_call.1} parent=1 // loop_exit
      _
    %639 = vsyncpa [#allocation3], 1
    %s640 = scalar_lea.sflag [#allocation3], 1
    %641 = vsyncpa %s640, 1

</llo_original>
